<compile_context>
chip_gen: v7x
topology: tpu7x:2x2x1
jax: 0.10.0
libtpu: 0.0.40
codegen_flags: <defaults>
</compile_context>

<pallas_src>
import jax
import jax.numpy as jnp
from jax.experimental import pallas as pl
from jax.experimental.pallas import tpu as pltpu


# ----------------------------------------------------------------------------- #
# Kernel: per (batch, spatial-tile) step
#   hi_ref : (C_high, T)  bf16   2x-upsampled high features, channel-major
#   lo_ref : (C_low,  T)  f32    low features, channel-major
#   whi_ref: (C_out, C_high) bf16   scale-folded conv_se weights (high part)
#   wlo_ref: (C_out, C_low)  f32    scale-folded conv_se weights (low part)
#   b_ref  : (C_out, 1)      f32    conv_se bias
#   out_ref: (C_out, T)      f32
# ----------------------------------------------------------------------------- #
def _fse_kernel(hi_ref, lo_ref, whi_ref, wlo_ref, b_ref, out_ref):
    acc = jnp.dot(whi_ref[...], hi_ref[...],
                  preferred_element_type=jnp.float32)        # (C_out, T)
    acc = acc + jnp.dot(wlo_ref[...], lo_ref[...],
                        preferred_element_type=jnp.float32)  # (C_out, T)
    out_ref[...] = jnp.maximum(acc + b_ref[...], 0.0)


def _pick_tile(hw, cap):
    """Largest legal lane tile: full extent if it fits, else a multiple-of-128 divisor."""
    if hw <= cap:
        return hw
    t = (cap // 128) * 128
    while t >= 128:
        if hw % t == 0:
            return t
        t -= 128
    return hw  # fallback: full extent (always a legal last-dim block)


def fse_module_pallas(high_features, low_features, params,
                      *, max_tile_hw=8192, vmem_budget_bytes=24 * 1024 * 1024):
    """high_features: (N, C_high, H, W); low_features: list of (N, C_i, 2H, 2W)."""
    w1, b1, w2, b2, wse, bse = params
    if not isinstance(low_features, (list, tuple)):
        low_features = [low_features]

    high = high_features.astype(jnp.float32)
    lows = [l.astype(jnp.float32) for l in low_features]
    low = lows[0] if len(lows) == 1 else jnp.concatenate(lows, axis=1)

    N, C_high, H, W = high.shape
    _, C_low, H2, W2 = low.shape
    assert H2 == 2 * H and W2 == 2 * W
    C_out = wse.shape[1]
    HW2 = H2 * W2

    # ---- SE gate from the small tensors (pool-of-upsample identity), plain JAX ----
    pooled = jnp.concatenate(
        [jnp.mean(high, axis=(2, 3)), jnp.mean(low, axis=(2, 3))], axis=1)   # (N, C_in)
    hid = jax.nn.relu(pooled @ w1 + b1)
    scale = jax.nn.sigmoid(hid @ w2 + b2)                                    # (N, C_in)

    # Fold the per-channel scale into the 1x1 conv weights, split by source.
    w_hat = wse.T[None, :, :] * scale[:, None, :]                            # (N, C_out, C_in)
    w_hi = w_hat[:, :, :C_high].astype(jnp.bfloat16)                         # (N, C_out, C_high)
    w_lo = w_hat[:, :, C_high:]                                              # (N, C_out, C_low) f32
    b_col = bse.reshape(C_out, 1).astype(jnp.float32)                        # (C_out, 1)

    # ---- 2x nearest upsample of high, channel-major, bf16 (single fused HBM write) ----
    up = jnp.broadcast_to(high[:, :, :, None, :, None], (N, C_high, H, 2, W, 2))
    up = up.astype(jnp.bfloat16).reshape(N, C_high, HW2)                     # (N, C_high, 4HW)
    low_flat = low.reshape(N, C_low, HW2)                                    # (N, C_low, 4HW)

    # ---- spatial tile: multiple of 128 lanes, under an explicit VMEM budget ----
    bytes_per_px = C_high * 2 + C_low * 4 + C_out * 4        # double-buffered in/out blocks
    budget_tile = max(128, (vmem_budget_bytes // (2 * bytes_per_px)) // 128 * 128)
    tile = _pick_tile(HW2, min(max_tile_hw, budget_tile))
    grid = (N, HW2 // tile)

    out = pl.pallas_call(
        _fse_kernel,
        out_shape=jax.ShapeDtypeStruct((N, C_out, HW2), jnp.float32),
        grid=grid,
        in_specs=[
            pl.BlockSpec((None, C_high, tile), lambda n, t: (n, 0, t)),
            pl.BlockSpec((None, C_low, tile), lambda n, t: (n, 0, t)),
            pl.BlockSpec((None, C_out, C_high), lambda n, t: (n, 0, 0)),
            pl.BlockSpec((None, C_out, C_low), lambda n, t: (n, 0, 0)),
            pl.BlockSpec((C_out, 1), lambda n, t: (0, 0)),
        ],
        out_specs=pl.BlockSpec((None, C_out, tile), lambda n, t: (n, 0, t)),
        compiler_params=pltpu.CompilerParams(
            dimension_semantics=("parallel", "parallel")),
    )(up, low_flat, w_hi, w_lo, b_col)

    # (N, C_out, 4HW) -> (N, C_out, 2H, 2W): pure metadata reshape, layout unchanged.
    return out.reshape(N, C_out, H2, W2)


def fse_module_reference(high_features, low_features, params):
    """Pure-JAX f32 reference of the PyTorch forward (for verification)."""
    w1, b1, w2, b2, wse, bse = params
    up = jnp.repeat(jnp.repeat(high_features, 2, axis=2), 2, axis=3)
    feats = jnp.concatenate([up] + list(low_features), axis=1)       # NCHW
    y = jnp.mean(feats, axis=(2, 3))                                 # (N, C_in)
    h = jax.nn.relu(y @ w1 + b1[0])
    s = jax.nn.sigmoid(h @ w2 + b2[0])
    feats = feats * s[:, :, None, None]
    out = jnp.einsum('nchw,co->nohw', feats, wse) + bse[0][None, :, None, None]
    return jax.nn.relu(out)


def make_params(key, c_in, c_out, reduction=16):
    """Deterministic synthetic weights. Conv2d 1x1 (o, i, 1, 1) stored as (i, o)."""
    c_hid = c_in // reduction
    k1, k2, k3, k4, k5, k6 = jax.random.split(key, 6)
    w1 = jax.random.normal(k1, (c_in, c_hid), jnp.float32) * 0.2
    b1 = jax.random.normal(k2, (1, c_hid), jnp.float32) * 0.1
    w2 = jax.random.normal(k3, (c_hid, c_in), jnp.float32) * 0.2
    b2 = jax.random.normal(k4, (1, c_in), jnp.float32) * 0.1
    wse = jax.random.normal(k5, (c_in, c_out), jnp.float32) * 0.2
    bse = jax.random.normal(k6, (1, c_out), jnp.float32) * 0.1
    return (w1, b1, w2, b2, wse, bse)


if __name__ == "__main__":
    # Shapes consistent with the module:
    #   high_feature_channel = 16, low_feature_channels = 16 (one low tensor)
    #   in_channel = 32 (divisible by reduction=16), out_channel = 16
    N, C_HIGH, H, W = 2, 16, 8, 8
    C_LOW = 16
    C_IN = C_HIGH + C_LOW
    C_OUT = C_HIGH

    key = jax.random.PRNGKey(0)
    k_high, k_low, k_params = jax.random.split(key, 3)
    high = jax.random.normal(k_high, (N, C_HIGH, H, W), jnp.float32)
    low = jax.random.normal(k_low, (N, C_LOW, 2 * H, 2 * W), jnp.float32)
    params = make_params(k_params, C_IN, C_OUT)

    fn = jax.jit(lambda h, l: fse_module_pallas(h, [l], params))
    out = jax.block_until_ready(fn(high, low))

    ref = fse_module_reference(high, [low], params)
    assert out.shape == (N, C_OUT, 2 * H, 2 * W), out.shape
    # Tolerance loosened vs f32 reference because the (upsampled) high path is
    # stored/multiplied in bf16; typical max|diff| is ~1e-2.
    assert jnp.allclose(out, ref, rtol=5e-2, atol=5e-2), \
        float(jnp.max(jnp.abs(out - ref)))

    print("KERNEL_OK")
</pallas_src>

<mosaic_0001>
module attributes {stable_mosaic.version = 11 : i64} {
  func.func @_fse_kernel(%arg0: i32, %arg1: i32, %arg2: memref<1x16x256xbf16, #tpu.memory_space<vmem>>, %arg3: memref<1x16x256xf32, #tpu.memory_space<vmem>>, %arg4: memref<1x16x16xbf16, #tpu.memory_space<vmem>>, %arg5: memref<1x16x16xf32, #tpu.memory_space<vmem>>, %arg6: memref<16x1xf32, #tpu.memory_space<vmem>>, %arg7: memref<1x16x256xf32, #tpu.memory_space<vmem>>) attributes {dimension_semantics = [#tpu.dimension_semantics<parallel>, #tpu.dimension_semantics<parallel>], iteration_bounds = array<i64: 2, 1>, scalar_prefetch = 0 : i64, scratch_operands = 0 : i64, tpu.core_type = #tpu.core_type<tc>, window_params = [{transform_indices = @transform_0, window_bounds = array<i64: 1, 16, 256>}, {transform_indices = @transform_1, window_bounds = array<i64: 1, 16, 256>}, {transform_indices = @transform_2, window_bounds = array<i64: 1, 16, 16>}, {transform_indices = @transform_3, window_bounds = array<i64: 1, 16, 16>}, {pipeline_mode = #tpu.pipeline_mode<synchronous>, transform_indices = @transform_4, window_bounds = array<i64: 16, 1>}, {transform_indices = @transform_5, window_bounds = array<i64: 1, 16, 256>}]} {
    %c0 = arith.constant 0 : index
    %c0_0 = arith.constant 0 : index
    %c0_1 = arith.constant 0 : index
    %0 = vector.load %arg4[%c0, %c0_0, %c0_1] : memref<1x16x16xbf16, #tpu.memory_space<vmem>>, vector<1x16x16xbf16>
    %1 = vector.shape_cast %0 : vector<1x16x16xbf16> to vector<16x16xbf16>
    %c0_2 = arith.constant 0 : index
    %c0_3 = arith.constant 0 : index
    %c0_4 = arith.constant 0 : index
    %2 = vector.load %arg2[%c0_2, %c0_3, %c0_4] : memref<1x16x256xbf16, #tpu.memory_space<vmem>>, vector<1x16x256xbf16>
    %3 = vector.shape_cast %2 : vector<1x16x256xbf16> to vector<16x256xbf16>
    %cst = arith.constant dense<0.000000e+00> : vector<16x256xf32>
    %4 = tpu.matmul %1, %3, %cst {dimension_numbers = #tpu.dot_dimension_numbers<[1], [0], [0], [1], [0, 0, 1, 1], [], []>} : vector<16x16xbf16>, vector<16x256xbf16>, vector<16x256xf32> -> vector<16x256xf32>
    %c0_5 = arith.constant 0 : index
    %c0_6 = arith.constant 0 : index
    %c0_7 = arith.constant 0 : index
    %5 = vector.load %arg5[%c0_5, %c0_6, %c0_7] : memref<1x16x16xf32, #tpu.memory_space<vmem>>, vector<1x16x16xf32>
    %6 = vector.shape_cast %5 : vector<1x16x16xf32> to vector<16x16xf32>
    %c0_8 = arith.constant 0 : index
    %c0_9 = arith.constant 0 : index
    %c0_10 = arith.constant 0 : index
    %7 = vector.load %arg3[%c0_8, %c0_9, %c0_10] : memref<1x16x256xf32, #tpu.memory_space<vmem>>, vector<1x16x256xf32>
    %8 = vector.shape_cast %7 : vector<1x16x256xf32> to vector<16x256xf32>
    %cst_11 = arith.constant dense<0.000000e+00> : vector<16x256xf32>
    %9 = tpu.matmul %6, %8, %cst_11 {dimension_numbers = #tpu.dot_dimension_numbers<[1], [0], [0], [1], [0, 0, 1, 1], [], []>} : vector<16x16xf32>, vector<16x256xf32>, vector<16x256xf32> -> vector<16x256xf32>
    %10 = arith.addf %4, %9 : vector<16x256xf32>
    %c0_12 = arith.constant 0 : index
    %c0_13 = arith.constant 0 : index
    %11 = vector.load %arg6[%c0_12, %c0_13] : memref<16x1xf32, #tpu.memory_space<vmem>>, vector<16x1xf32>
    %12 = vector.broadcast %11 : vector<16x1xf32> to vector<16x256xf32>
    %13 = arith.addf %10, %12 : vector<16x256xf32>
    %cst_14 = arith.constant 0.000000e+00 : f32
    %14 = vector.broadcast %cst_14 : f32 to vector<16x256xf32>
    %15 = arith.maximumf %13, %14 : vector<16x256xf32>
    %c0_15 = arith.constant 0 : index
    %c0_16 = arith.constant 0 : index
    %c0_17 = arith.constant 0 : index
    %16 = vector.load %arg7[%c0_15, %c0_16, %c0_17] : memref<1x16x256xf32, #tpu.memory_space<vmem>>, vector<1x16x256xf32>
    %17 = vector.shape_cast %16 : vector<1x16x256xf32> to vector<16x256xf32>
    %18 = vector.shape_cast %15 : vector<16x256xf32> to vector<1x16x256xf32>
    tpu.vector_store %arg7[%c0_15, %c0_16, %c0_17], %18 {strides = array<i32>} : memref<1x16x256xf32, #tpu.memory_space<vmem>>, vector<1x16x256xf32>,
    return
  }
  func.func @transform_0(%arg0: i32, %arg1: i32) -> (i32, i32, i32) {
    %c0_i32 = arith.constant 0 : i32
    %c0_i32_0 = arith.constant 0 : i32
    return %arg0, %c0_i32, %arg1 : i32, i32, i32
  }
  func.func @transform_1(%arg0: i32, %arg1: i32) -> (i32, i32, i32) {
    %c0_i32 = arith.constant 0 : i32
    %c0_i32_0 = arith.constant 0 : i32
    return %arg0, %c0_i32, %arg1 : i32, i32, i32
  }
  func.func @transform_2(%arg0: i32, %arg1: i32) -> (i32, i32, i32) {
    %c0_i32 = arith.constant 0 : i32
    %c0_i32_0 = arith.constant 0 : i32
    %c0_i32_1 = arith.constant 0 : i32
    return %arg0, %c0_i32, %c0_i32_0 : i32, i32, i32
  }
  func.func @transform_3(%arg0: i32, %arg1: i32) -> (i32, i32, i32) {
    %c0_i32 = arith.constant 0 : i32
    %c0_i32_0 = arith.constant 0 : i32
    %c0_i32_1 = arith.constant 0 : i32
    return %arg0, %c0_i32, %c0_i32_0 : i32, i32, i32
  }
  func.func @transform_4(%arg0: i32, %arg1: i32) -> (i32, i32) {
    %c0_i32 = arith.constant 0 : i32
    %c0_i32_0 = arith.constant 0 : i32
    %c0_i32_1 = arith.constant 0 : i32
    return %c0_i32, %c0_i32_0 : i32, i32
  }
  func.func @transform_5(%arg0: i32, %arg1: i32) -> (i32, i32, i32) {
    %c0_i32 = arith.constant 0 : i32
    %c0_i32_0 = arith.constant 0 : i32
    return %arg0, %c0_i32, %arg1 : i32, i32, i32
  }
}

</mosaic_0001>

<llo_original>
// kernel: _lambda_.1
$region0: #{_lambda_.1}
  #allocation0 [shape = 'u32[]', space=smem, size = 0x4, offset = 0x4, fixed_abs, tag = 'smem constant byte address 0x4 - core index']
  #allocation1 [shape = 'u32[144,128]{1,0:T(1,128)}', space=vmem, size = 0x12000, scoped, tag = 'internal scratch']
  %s0 = inlined_call_operand.vmem [shape: bf16[2,16,256], index: 0, kind: input, shape index: {}]
  %s1 = inlined_call_operand.vmem [shape: f32[2,16,256], index: 1, kind: input, shape index: {}]
  %s2 = inlined_call_operand.vmem [shape: bf16[2,16,16], index: 2, kind: input, shape index: {}]
  %s3 = inlined_call_operand.vmem [shape: f32[2,16,16], index: 3, kind: input, shape index: {}]
  %s4 = inlined_call_operand.vmem [shape: f32[16,1], index: 4, kind: input, shape index: {}]
  %s5 = inlined_call_operand.vmem [shape: f32[2,16,256], index: 5, kind: output, shape index: {}]
  %s6 = sld [smem:[#allocation0]]
  $region53: #{_lambda_.1} parent=0
    _
  %s8 = ssub.s32 1, %s6
  %s9 = scalar_select 0, %s8, %s6
  loop: start=0, step=1, limit=4
  $region2: #{_lambda_.1} parent=0 // loop_pre_header
    _
  $region3: #{_lambda_.1} parent=0 // loop_header
    %s11 = sphi 0, %s15
    %p12 = scmp.ge.s32.totalorder %s11, 4
    %s18 = sphi 0, %s30
    %s19 = sphi 0, %s26
    %s20 = sphi 0, %s18
    %s21 = sphi 0, %s19
    %s22 = sphi 0, %s20
    %s23 = sphi 0, %s21
    %s35 = sphi 0, %s37
    %s38 = sphi 0, %s35
    %s39 = sphi 0, %s38
    %s55 = sphi 0, %s39
    %s63 = sphi 0, %s65
    %s66 = sphi 0, %s63
    %s67 = sphi 0, %s66
    %s83 = sphi 0, %s67
    %s89 = sphi 0, %s91
    %s92 = sphi 0, %s89
    %s93 = sphi 0, %s92
    %s109 = sphi 0, %s93
    %s115 = sphi 0, %s117
    %s118 = sphi 0, %s115
    %s119 = sphi 0, %s118
    %s135 = sphi 0, %s119
    %s139 = sphi 0, %s139
    %s141 = sphi 0, %s139
    %s142 = sphi 0, %s141
    %s156 = sphi 0, %s142
    %s164 = sphi 0, %s166
    %s167 = sphi 0, %s164
    %s168 = sphi 0, %s167
    %s184 = sphi 0, %s168
  $region4: #{_lambda_.1} parent=0 // loop_header_branch
    %14 = sbr.rel (%p12) target = $region8
  $region5: #{_lambda_.1} parent=0 // loop_body
    %s16 = ssub.s32 %s11, 1
    %s17 = ssub.s32 %s11, 2
    %s24 = sadd.s32 1, %s19
    %p25 = scmp.ge.s32.totalorder %s24, 1
    %s26 = scalar_select %p25, 0, %s24
    %s27 = sadd.s32 1, %s18
    %s28 = scalar_select %p25, %s27, %s18
    %p29 = scmp.ge.s32.totalorder %s28, 2
    %s30 = scalar_select %p29, 0, %s28
    %s31 = ssub.s32 %s18, %s30
    %s32 = ssub.s32 %s19, %s26
    %s33 = sor.u32 %s31, %s32
    %p34 = scmp.eq.s32.totalorder %s33, 0
    %s36 = sadd.s32 %s35, 1
    %s37 = scalar_select %p34, %s35, %s36
    %p40 = pneg %p34
    %p41 = scmp.eq.s32.totalorder %s11, 1
    %p42 = por %p40, %p41
    %p43 = scmp.ne.s32.totalorder %s35, %s38
    %p44 = scmp.eq.s32.totalorder %s11, 0
    %p45 = por %p43, %p44
    %p46 = scmp.ne.s32.totalorder %s35, %s38
    %p47 = scmp.eq.s32.totalorder %s16, 1
    %p48 = por %p46, %p47
    %p49 = scmp.ne.s32.totalorder %s38, %s39
    %p50 = scmp.eq.s32.totalorder %s16, 0
    %p51 = por %p49, %p50
    %p52 = scmp.ne.s32.totalorder %s38, %s39
    %p53 = scmp.eq.s32.totalorder %s17, 1
    %p54 = por %p52, %p53
    %p56 = scmp.ne.s32.totalorder %s39, %s55
    %p57 = scmp.eq.s32.totalorder %s17, 0
    %p58 = por %p56, %p57
    %s59 = ssub.s32 %s18, %s30
    %s60 = ssub.s32 %s19, %s26
    %s61 = sor.u32 %s59, %s60
    %p62 = scmp.eq.s32.totalorder %s61, 0
    %s64 = sadd.s32 %s63, 1
    %s65 = scalar_select %p62, %s63, %s64
    %p68 = pneg %p62
    %p69 = scmp.eq.s32.totalorder %s11, 1
    %p70 = por %p68, %p69
    %p71 = scmp.ne.s32.totalorder %s63, %s66
    %p72 = scmp.eq.s32.totalorder %s11, 0
    %p73 = por %p71, %p72
    %p74 = scmp.ne.s32.totalorder %s63, %s66
    %p75 = scmp.eq.s32.totalorder %s16, 1
    %p76 = por %p74, %p75
    %p77 = scmp.ne.s32.totalorder %s66, %s67
    %p78 = scmp.eq.s32.totalorder %s16, 0
    %p79 = por %p77, %p78
    %p80 = scmp.ne.s32.totalorder %s66, %s67
    %p81 = scmp.eq.s32.totalorder %s17, 1
    %p82 = por %p80, %p81
    %p84 = scmp.ne.s32.totalorder %s67, %s83
    %p85 = scmp.eq.s32.totalorder %s17, 0
    %p86 = por %p84, %p85
    %s87 = ssub.s32 %s18, %s30
    %p88 = scmp.eq.s32.totalorder %s87, 0
    %s90 = sadd.s32 %s89, 1
    %s91 = scalar_select %p88, %s89, %s90
    %p94 = pneg %p88
    %p95 = scmp.eq.s32.totalorder %s11, 1
    %p96 = por %p94, %p95
    %p97 = scmp.ne.s32.totalorder %s89, %s92
    %p98 = scmp.eq.s32.totalorder %s11, 0
    %p99 = por %p97, %p98
    %p100 = scmp.ne.s32.totalorder %s89, %s92
    %p101 = scmp.eq.s32.totalorder %s16, 1
    %p102 = por %p100, %p101
    %p103 = scmp.ne.s32.totalorder %s92, %s93
    %p104 = scmp.eq.s32.totalorder %s16, 0
    %p105 = por %p103, %p104
    %p106 = scmp.ne.s32.totalorder %s92, %s93
    %p107 = scmp.eq.s32.totalorder %s17, 1
    %p108 = por %p106, %p107
    %p110 = scmp.ne.s32.totalorder %s93, %s109
    %p111 = scmp.eq.s32.totalorder %s17, 0
    %p112 = por %p110, %p111
    %s113 = ssub.s32 %s18, %s30
    %p114 = scmp.eq.s32.totalorder %s113, 0
    %s116 = sadd.s32 %s115, 1
    %s117 = scalar_select %p114, %s115, %s116
    %p120 = pneg %p114
    %p121 = scmp.eq.s32.totalorder %s11, 1
    %p122 = por %p120, %p121
    %p123 = scmp.ne.s32.totalorder %s115, %s118
    %p124 = scmp.eq.s32.totalorder %s11, 0
    %p125 = por %p123, %p124
    %p126 = scmp.ne.s32.totalorder %s115, %s118
    %p127 = scmp.eq.s32.totalorder %s16, 1
    %p128 = por %p126, %p127
    %p129 = scmp.ne.s32.totalorder %s118, %s119
    %p130 = scmp.eq.s32.totalorder %s16, 0
    %p131 = por %p129, %p130
    %p132 = scmp.ne.s32.totalorder %s118, %s119
    %p133 = scmp.eq.s32.totalorder %s17, 1
    %p134 = por %p132, %p133
    %p136 = scmp.ne.s32.totalorder %s119, %s135
    %p137 = scmp.eq.s32.totalorder %s17, 0
    %p138 = por %p136, %p137
    %s140 = sadd.s32 %s139, 1
    %p143 = scmp.eq.s32.totalorder %s11, 1
    %p144 = scmp.ne.s32.totalorder %s139, %s141
    %p145 = scmp.eq.s32.totalorder %s11, 0
    %p146 = por %p144, %p145
    %p147 = scmp.ne.s32.totalorder %s139, %s141
    %p148 = scmp.eq.s32.totalorder %s16, 1
    %p149 = por %p147, %p148
    %p150 = scmp.ne.s32.totalorder %s141, %s142
    %p151 = scmp.eq.s32.totalorder %s16, 0
    %p152 = por %p150, %p151
    %p153 = scmp.ne.s32.totalorder %s141, %s142
    %p154 = scmp.eq.s32.totalorder %s17, 1
    %p155 = por %p153, %p154
    %p157 = scmp.ne.s32.totalorder %s142, %s156
    %p158 = scmp.eq.s32.totalorder %s17, 0
    %p159 = por %p157, %p158
    %s160 = ssub.s32 %s18, %s30
    %s161 = ssub.s32 %s19, %s26
    %s162 = sor.u32 %s160, %s161
    %p163 = scmp.eq.s32.totalorder %s162, 0
    %s165 = sadd.s32 %s164, 1
    %s166 = scalar_select %p163, %s164, %s165
    %p169 = pneg %p163
    %p170 = scmp.eq.s32.totalorder %s11, 1
    %p171 = por %p169, %p170
    %p172 = scmp.ne.s32.totalorder %s164, %s167
    %p173 = scmp.eq.s32.totalorder %s11, 0
    %p174 = por %p172, %p173
    %p175 = scmp.ne.s32.totalorder %s164, %s167
    %p176 = scmp.eq.s32.totalorder %s16, 1
    %p177 = por %p175, %p176
    %p178 = scmp.ne.s32.totalorder %s167, %s168
    %p179 = scmp.eq.s32.totalorder %s16, 0
    %p180 = por %p178, %p179
    %p181 = scmp.ne.s32.totalorder %s167, %s168
    %p182 = scmp.eq.s32.totalorder %s17, 1
    %p183 = por %p181, %p182
    %p185 = scmp.ne.s32.totalorder %s168, %s184
    %p186 = scmp.eq.s32.totalorder %s17, 0
    %p187 = por %p185, %p186
    %p188 = scmp.le.s32.totalorder 1, %s11
    %p189 = scmp.lt.s32.totalorder %s11, 3
    %p190 = pnand %p188, %p189
    %p191 = pneg %p190
    // Predicated region
    $region9: #{_lambda_.1} parent=5 // pred_check
      _
    $region10: #{_lambda_.1} parent=5 // pred_check_branch
      %193 = sbr.rel (%p190) target = $region12
    $region11: #{_lambda_.1} parent=5 // pred_region
      %s194 = ssub.s32 %s11, 1
      // Predicated region
      $region13: #{_lambda_.1} parent=11 // pred_check
        %p195 = pneg %p152
      $region14: #{_lambda_.1} parent=11 // pred_check_branch
        %197 = sbr.rel (%p195) target = $region16
      $region15: #{_lambda_.1} parent=11 // pred_region
        _
      $region16: #{_lambda_.1} parent=11 // pred_fallthru
        _
    $region12: #{_lambda_.1} parent=5 // pred_fallthru
      _
    %p198 = scmp.lt.s32.totalorder %s11, 2
    // Predicated region
    $region17: #{_lambda_.1} parent=5 // pred_check
      %p199 = pneg %p198
    $region18: #{_lambda_.1} parent=5 // pred_check_branch
      %201 = sbr.rel (%p199) target = $region20
    $region19: #{_lambda_.1} parent=5 // pred_region
      // Predicated region
      $region21: #{_lambda_.1} parent=19 // pred_check
        %p202 = pneg %p45
      $region22: #{_lambda_.1} parent=19 // pred_check_branch
        %204 = sbr.rel (%p202) target = $region24
      $region23: #{_lambda_.1} parent=19 // pred_region
        %s205 = smul.u32 2, %s19
        %p206 = scmp.lt.s32.totalorder %s18, 1
        %s207 = scalar_select %p206, %s18, 1
        %p208 = scmp.lt.s32.totalorder %s205, 1
        %s209 = scalar_select %p208, %s205, 1
        %s210 = smul.addr %s207, 4
        %s211 = sadd.s32 %s209, %s210
        %s212 = smul.addr %s211, 4
        %s213 = scalar_lea.vmem %s0, %s212
        %s214 = smul.u32 2, %s19
      $region24: #{_lambda_.1} parent=19 // pred_fallthru
        _
      // Predicated region
      $region25: #{_lambda_.1} parent=19 // pred_check
        %p215 = pneg %p73
      $region26: #{_lambda_.1} parent=19 // pred_check_branch
        %217 = sbr.rel (%p215) target = $region28
      $region27: #{_lambda_.1} parent=19 // pred_region
        %s218 = smul.u32 2, %s19
        %p219 = scmp.lt.s32.totalorder %s18, 1
        %s220 = scalar_select %p219, %s18, 1
        %p221 = scmp.lt.s32.totalorder %s218, 1
        %s222 = scalar_select %p221, %s218, 1
        %s223 = smul.addr %s220, 4
        %s224 = sadd.s32 %s222, %s223
        %s225 = smul.addr %s224, 8
        %s226 = scalar_lea.vmem %s1, %s225
        %s227 = smul.u32 2, %s19
      $region28: #{_lambda_.1} parent=19 // pred_fallthru
        _
      // Predicated region
      $region29: #{_lambda_.1} parent=19 // pred_check
        %p228 = pneg %p99
      $region30: #{_lambda_.1} parent=19 // pred_check_branch
        %230 = sbr.rel (%p228) target = $region32
      $region31: #{_lambda_.1} parent=19 // pred_region
        %p231 = scmp.lt.s32.totalorder %s18, 1
        %s232 = scalar_select %p231, %s18, 1
        %s233 = smul.addr %s232, 2
        %s234 = smul.addr %s233, 4
        %s235 = scalar_lea.vmem %s2, %s234
      $region32: #{_lambda_.1} parent=19 // pred_fallthru
        _
      // Predicated region
      $region33: #{_lambda_.1} parent=19 // pred_check
        %p236 = pneg %p125
      $region34: #{_lambda_.1} parent=19 // pred_check_branch
        %238 = sbr.rel (%p236) target = $region36
      $region35: #{_lambda_.1} parent=19 // pred_region
        %p239 = scmp.lt.s32.totalorder %s18, 1
        %s240 = scalar_select %p239, %s18, 1
        %s241 = smul.addr %s240, 2
        %s242 = smul.addr %s241, 8
        %s243 = scalar_lea.vmem %s3, %s242
      $region36: #{_lambda_.1} parent=19 // pred_fallthru
        _
    $region20: #{_lambda_.1} parent=5 // pred_fallthru
      _
    %p244 = scmp.le.s32.totalorder 1, %s11
    %p245 = scmp.lt.s32.totalorder %s11, 3
    %p246 = pnand %p244, %p245
    %p247 = pneg %p246
    // Predicated region
    $region37: #{_lambda_.1} parent=5 // pred_check
      _
    $region38: #{_lambda_.1} parent=5 // pred_check_branch
      %249 = sbr.rel (%p246) target = $region40
    $region39: #{_lambda_.1} parent=5 // pred_region
      %s250 = ssub.s32 %s11, 1
      %s251 = smul.u32 2, %s21
      %p252 = scmp.lt.s32.totalorder %s20, 1
      %s253 = scalar_select %p252, %s20, 1
      %p254 = scmp.lt.s32.totalorder %s251, 1
      %s255 = scalar_select %p254, %s251, 1
      %s256 = smul.addr %s253, 4
      %s257 = sadd.s32 %s255, %s256
      %s258 = smul.addr %s257, 4
      %s259 = scalar_lea.vmem %s0, %s258
      %p260 = pneg %p51
      %p261 = pneg %p48
      %s262 = smul.u32 2, %s21
      %p263 = scmp.lt.s32.totalorder %s20, 1
      %s264 = scalar_select %p263, %s20, 1
      %p265 = scmp.lt.s32.totalorder %s262, 1
      %s266 = scalar_select %p265, %s262, 1
      %s267 = smul.addr %s264, 4
      %s268 = sadd.s32 %s266, %s267
      %s269 = smul.addr %s268, 8
      %s270 = scalar_lea.vmem %s1, %s269
      %p271 = pneg %p79
      %p272 = pneg %p76
      %p273 = scmp.lt.s32.totalorder %s20, 1
      %s274 = scalar_select %p273, %s20, 1
      %s275 = smul.addr %s274, 2
      %s276 = smul.addr %s275, 4
      %s277 = scalar_lea.vmem %s2, %s276
      %p278 = pneg %p105
      %p279 = pneg %p102
      %p280 = scmp.lt.s32.totalorder %s20, 1
      %s281 = scalar_select %p280, %s20, 1
      %s282 = smul.addr %s281, 2
      %s283 = smul.addr %s282, 8
      %s284 = scalar_lea.vmem %s3, %s283
      %p285 = pneg %p131
      %p286 = pneg %p128
      %p287 = pneg %p152
      %p288 = pneg %p149
      %p289 = pneg %p180
      %p290 = pneg %p177
      %s291 = smul.u32 2, %s21
      %p292 = scmp.lt.s32.totalorder %s20, 1
      %s293 = scalar_select %p292, %s20, 1
      %p294 = scmp.lt.s32.totalorder %s291, 1
      %s295 = scalar_select %p294, %s291, 1
      %s296 = smul.addr %s293, 4
      %s297 = sadd.s32 %s295, %s296
      %s298 = smul.addr %s297, 8
      %s299 = scalar_lea.vmem %s5, %s298
      %s300 = smul.u32 2, %s21
      %p301 = scmp.lt.s32.totalorder %s20, 1
      %s302 = scalar_select %p301, %s20, 1
      %p303 = scmp.lt.s32.totalorder %s300, 1
      %s304 = scalar_select %p303, %s300, 1
      %s305 = smul.addr %s302, 4
      %s306 = sadd.s32 %s304, %s305
      %s307 = smul.addr %s306, 4
      %s308 = scalar_lea.vmem %s0, %s307
      %s309 = smul.u32 2, %s21
      %s310 = smul.u32 2, %s21
      %p311 = scmp.lt.s32.totalorder %s20, 1
      %s312 = scalar_select %p311, %s20, 1
      %p313 = scmp.lt.s32.totalorder %s310, 1
      %s314 = scalar_select %p313, %s310, 1
      %s315 = smul.addr %s312, 4
      %s316 = sadd.s32 %s314, %s315
      %s317 = smul.addr %s316, 8
      %s318 = scalar_lea.vmem %s1, %s317
      %s319 = smul.u32 2, %s21
      %p320 = scmp.lt.s32.totalorder %s20, 1
      %s321 = scalar_select %p320, %s20, 1
      %s322 = smul.addr %s321, 2
      %s323 = smul.addr %s322, 4
      %s324 = scalar_lea.vmem %s2, %s323
      %p325 = scmp.lt.s32.totalorder %s20, 1
      %s326 = scalar_select %p325, %s20, 1
      %s327 = smul.addr %s326, 2
      %s328 = smul.addr %s327, 8
      %s329 = scalar_lea.vmem %s3, %s328
      %s330 = smul.u32 2, %s21
      %p331 = scmp.lt.s32.totalorder %s20, 1
      %s332 = scalar_select %p331, %s20, 1
      %p333 = scmp.lt.s32.totalorder %s330, 1
      %s334 = scalar_select %p333, %s330, 1
      %s335 = smul.addr %s332, 4
      %s336 = sadd.s32 %s334, %s335
      %s337 = smul.addr %s336, 8
      %s338 = scalar_lea.vmem %s5, %s337
      %s339 = smul.u32 2, %s21
      %v341 = vld [vmem:[%s324] sm:$0xf]
      %v342 = vld [vmem:[%s324 + $0x4] sm:$0xf]
      %v343 = vld [vmem:[%s308] sm:$0xff]
      %v344 = vld [vmem:[%s308 + $0x8] sm:$0xff]
      %v345 = vld [vmem:[%s329] sm:$0xff]
      %v346 = vld [vmem:[%s329 + $0x8] sm:$0xff]
      %v347 = vld [vmem:[%s318] sm:$0xff]
      %v348 = vld [vmem:[%s318 + $0x8] sm:$0xff]
      %v349 = vld [vmem:[%s318 + $0x10] sm:$0xff]
      %v350 = vld [vmem:[%s318 + $0x18] sm:$0xff]
      %vm351 = vcmask 130048
      %v353 = vsel %vm351, %v345, 0
      %v356 = vsel %vm351, %v346, 0
      %358 = vmatprep.subr.mxu0 %v348
      %359 = vmatpush1.msra.mxu0 %v347
      %360 = vmatprep.subr.mxu0 %v350
      %361 = vmatpush1.msra.mxu0 %v349
      %362 = vmatprep.subr.mxu0 0.0
      %363 = vmatpush1.msra.mxu0 0.0
      %364 = vmatprep.subr.mxu0 0.0
      %365 = vmatpush1.msra.mxu0 0.0
      %366 = vmatprep.subr.mxu0 0.0
      %367 = vmatpush1.msra.mxu0 0.0
      %368 = vmatprep.subr.mxu0 0.0
      %369 = vmatpush1.msra.mxu0 0.0
      %370 = vmatprep.subr.mxu0 0.0
      %371 = vmatpush1.msra.mxu0 0.0
      %372 = vmatprep.subr.mxu0 0.0
      %373 = vmatpush1.msra.mxu0 0.0
      %374 = vmatprep.subr.mxu0 0.0
      %375 = vmatpush1.msra.mxu0 0.0
      %376 = vmatprep.subr.mxu0 0.0
      %377 = vmatpush1.msra.mxu0 0.0
      %378 = vmatprep.subr.mxu0 0.0
      %379 = vmatpush1.msra.mxu0 0.0
      %380 = vmatprep.subr.mxu0 0.0
      %381 = vmatpush1.msra.mxu0 0.0
      %382 = vmatprep.subr.mxu0 0.0
      %383 = vmatpush1.msra.mxu0 0.0
      %384 = vmatprep.subr.mxu0 0.0
      %385 = vmatpush1.msra.mxu0 0.0
      %386 = vmatprep.subr.mxu0 0.0
      %387 = vmatpush1.msra.mxu0 0.0
      %388 = vmatprep.subr.mxu0 0.0
      %389 = vmatpush1.msra.mxu0 0.0
      %390 = vmatprep.subr.mxu0 0.0
      %391 = vmatpush1.msra.mxu0 0.0
      %392 = vmatprep.subr.mxu0 0.0
      %393 = vmatpush1.msra.mxu0 0.0
      %394 = vmatprep.subr.mxu0 0.0
      %395 = vmatpush1.msra.mxu0 0.0
      %396 = vmatprep.subr.mxu0 0.0
      %397 = vmatpush1.msra.mxu0 0.0
      %398 = vmatprep.subr.mxu0 0.0
      %399 = vmatpush1.msra.mxu0 0.0
      %400 = vmatprep.subr.mxu0 0.0
      %401 = vmatpush1.msra.mxu0 0.0
      %402 = vmatprep.subr.mxu0 0.0
      %403 = vmatpush1.msra.mxu0 0.0
      %404 = vmatprep.subr.mxu0 0.0
      %405 = vmatpush1.msra.mxu0 0.0
      %406 = vmatprep.subr.mxu0 0.0
      %407 = vmatpush1.msra.mxu0 0.0
      %408 = vmatprep.subr.mxu0 0.0
      %409 = vmatpush1.msra.mxu0 0.0
      %410 = vmatprep.subr.mxu0 0.0
      %411 = vmatpush1.msra.mxu0 0.0
      %412 = vmatprep.subr.mxu0 0.0
      %413 = vmatpush1.msra.mxu0 0.0
      %414 = vmatprep.subr.mxu0 0.0
      %415 = vmatpush1.msra.mxu0 0.0
      %416 = vmatprep.subr.mxu0 0.0
      %417 = vmatpush1.msra.mxu0 0.0
      %418 = vmatprep.subr.mxu0 0.0
      %419 = vmatpush1.msra.mxu0 0.0
      %420 = vmatprep.subr.mxu0 0.0
      %421 = vmatpush1.msra.mxu0 0.0
      %422 = vmatprep.mubr.f32.mxu0 0.0
      %423 = vmatmul.mubr.f32.gmra.mrb[0].mxu0 %v353
      %v424 = vpop.f32.mrb[0].mxu0
      %v425 = vadd.f32 0.0, %v424
      %v426 = vpop.f32.mrb[0].mxu0
      %v427 = vadd.f32 0.0, %v426
      %428 = vmatprep.mubr.f32.mxu0 0.0
      %429 = vmatmul.mubr.f32.gmra.mrb[0].mxu0 %v356
      %v430 = vpop.f32.mrb[0].mxu0
      %v431 = vadd.f32 0.0, %v430
      %v432 = vpop.f32.mrb[0].mxu0
      %v433 = vadd.f32 0.0, %v432
      %434 = vdwg.mxu0
      %v437 = vunpack.c.l.b16 %v341
      %v438 = vunpack.c.l.b16 %v342
      %v439 = vpack.c.b16 %v438, %v437
      %v442 = vunpack.c.l.b16 %v343
      %v443 = vunpack.c.h.b16 %v343
      %v444 = vunpack.c.l.b16 %v344
      %v445 = vunpack.c.h.b16 %v344
      %v446 = vpack.c.b16 %v444, %v442
      %v447 = vpack.c.b16 %v445, %v443
      %v451 = vsel %vm351, %v439, 0
      %453 = vmatprep.subr.bf16.mxu0 %v447
      %454 = vmatpush1.bf16.msra.mxu0 %v446
      %455 = vmatprep.subr.bf16.mxu0 0
      %456 = vmatpush1.bf16.msra.mxu0 0
      %457 = vmatprep.subr.bf16.mxu0 0
      %458 = vmatpush1.bf16.msra.mxu0 0
      %459 = vmatprep.subr.bf16.mxu0 0
      %460 = vmatpush1.bf16.msra.mxu0 0
      %461 = vmatprep.subr.bf16.mxu0 0
      %462 = vmatpush1.bf16.msra.mxu0 0
      %463 = vmatprep.subr.bf16.mxu0 0
      %464 = vmatpush1.bf16.msra.mxu0 0
      %465 = vmatprep.subr.bf16.mxu0 0
      %466 = vmatpush1.bf16.msra.mxu0 0
      %467 = vmatprep.subr.bf16.mxu0 0
      %468 = vmatpush1.bf16.msra.mxu0 0
      %469 = vmatprep.subr.bf16.mxu0 0
      %470 = vmatpush1.bf16.msra.mxu0 0
      %471 = vmatprep.subr.bf16.mxu0 0
      %472 = vmatpush1.bf16.msra.mxu0 0
      %473 = vmatprep.subr.bf16.mxu0 0
      %474 = vmatpush1.bf16.msra.mxu0 0
      %475 = vmatprep.subr.bf16.mxu0 0
      %476 = vmatpush1.bf16.msra.mxu0 0
      %477 = vmatprep.subr.bf16.mxu0 0
      %478 = vmatpush1.bf16.msra.mxu0 0
      %479 = vmatprep.subr.bf16.mxu0 0
      %480 = vmatpush1.bf16.msra.mxu0 0
      %481 = vmatprep.subr.bf16.mxu0 0
      %482 = vmatpush1.bf16.msra.mxu0 0
      %483 = vmatprep.subr.bf16.mxu0 0
      %484 = vmatpush1.bf16.msra.mxu0 0
      %485 = vmatprep.mubr.bf16.mxu0 0
      %486 = vmatmul.mubr.bf16.gmra.mrb[0].mxu0 %v451
      %v487 = vpop.f32.mrb[0].mxu0
      %v488 = vadd.f32 %v425, %v487
      %v489 = vpop.f32.mrb[0].mxu0
      %v490 = vadd.f32 %v427, %v489
      %v491 = vpop.f32.mrb[0].mxu0
      %v492 = vadd.f32 %v431, %v491
      %v493 = vpop.f32.mrb[0].mxu0
      %v494 = vadd.f32 %v433, %v493
      %495 = vdwg.mxu0
      %v496 = vld [vmem:[%s4] sm:$0xff]
      %v497 = vld [vmem:[%s4 + $0x8] sm:$0xff]
      %499 = vset.pattern.permute.xlu0 0
      %500 = vperm.xlu0 %499, %v496
      %v501 = vpop.permute.xlu0 %500
      %504 = vset.pattern.permute.xlu0 0
      %505 = vperm.xlu0 %504, %v497
      %v506 = vpop.permute.xlu0 %505
      %v508 = vadd.f32 %v488, %v501
      %v509 = vadd.f32 %v490, %v501
      %v510 = vadd.f32 %v492, %v506
      %v511 = vadd.f32 %v494, %v506
      %v512 = vmax.f32 %v508, 0.0
      %v513 = vmax.f32 %v509, 0.0
      %v514 = vmax.f32 %v510, 0.0
      %v515 = vmax.f32 %v511, 0.0
      %516 = vst [vmem:[%s338] sm:$0xff] %v512
      %517 = vst [vmem:[%s338 + $0x8] sm:$0xff] %v513
      %518 = vst [vmem:[%s338 + $0x10] sm:$0xff] %v514
      %519 = vst [vmem:[%s338 + $0x18] sm:$0xff] %v515
      %s520 = smul.u32 2, %s21
      %p521 = scmp.lt.s32.totalorder %s20, 1
      %s522 = scalar_select %p521, %s20, 1
      %p523 = scmp.lt.s32.totalorder %s520, 1
      %s524 = scalar_select %p523, %s520, 1
      %s525 = smul.addr %s522, 4
      %s526 = sadd.s32 %s524, %s525
      %s527 = smul.addr %s526, 8
      %s528 = scalar_lea.vmem %s5, %s527
      // Predicated region
      $region41: #{_lambda_.1} parent=39 // pred_check
        %p529 = pneg %p177
      $region42: #{_lambda_.1} parent=39 // pred_check_branch
        %531 = sbr.rel (%p529) target = $region44
      $region43: #{_lambda_.1} parent=39 // pred_region
        %s532 = smul.u32 2, %s21
      $region44: #{_lambda_.1} parent=39 // pred_fallthru
        _
    $region40: #{_lambda_.1} parent=5 // pred_fallthru
      _
    %p533 = scmp.le.s32.totalorder 2, %s11
    // Predicated region
    $region45: #{_lambda_.1} parent=5 // pred_check
      %p534 = pneg %p533
    $region46: #{_lambda_.1} parent=5 // pred_check_branch
      %536 = sbr.rel (%p534) target = $region48
    $region47: #{_lambda_.1} parent=5 // pred_region
      %s537 = ssub.s32 %s11, 2
      // Predicated region
      $region49: #{_lambda_.1} parent=47 // pred_check
        %p538 = pneg %p183
      $region50: #{_lambda_.1} parent=47 // pred_check_branch
        %540 = sbr.rel (%p538) target = $region52
      $region51: #{_lambda_.1} parent=47 // pred_region
        %s541 = smul.u32 2, %s23
        %p542 = scmp.lt.s32.totalorder %s22, 1
        %s543 = scalar_select %p542, %s22, 1
        %p544 = scmp.lt.s32.totalorder %s541, 1
        %s545 = scalar_select %p544, %s541, 1
        %s546 = smul.addr %s543, 4
        %s547 = sadd.s32 %s545, %s546
        %s548 = smul.addr %s547, 8
        %s549 = scalar_lea.vmem %s5, %s548
      $region52: #{_lambda_.1} parent=47 // pred_fallthru
        _
    $region48: #{_lambda_.1} parent=5 // pred_fallthru
      _
  $region6: #{_lambda_.1} parent=0 // loop_footer
    %s15 = sadd.s32 1, %s11
  $region7: #{_lambda_.1} parent=0 // loop_footer_branch
    %10 = sbr.rel target = $region3
  $region8: #{_lambda_.1} parent=0 // loop_exit
    _

</llo_original>
